<compile_context>
chip_gen: v7x
topology: tpu7x:2x2x1
jax: 0.10.0
libtpu: 0.0.40
codegen_flags: <defaults>
</compile_context>

<pallas_src>
import functools

import jax
import jax.numpy as jnp
from jax import lax
from jax.experimental import pallas as pl
from jax.experimental.pallas import tpu as pltpu

LANE = 128
MAX_BLOCK_ROWS = 1024  # (1024, 128) f32 tile = 512 KiB; portable across v5e/v6e/v7x


def _gan_loss_sum_kernel(x_ref, out_ref, acc_ref, *,
                         target, use_lsgan, n_valid, block_rows):
    """Accumulate per-tile loss into a VMEM vreg-shaped accumulator; reduce once."""
    i = pl.program_id(0)

    @pl.when(i == 0)
    def _():
        acc_ref[...] = jnp.zeros_like(acc_ref)

    x = x_ref[...].astype(jnp.float32)

    # Global (row-major) element index of every slot in this block, used to mask
    # the ragged tail (and any garbage rows of a partial last block).
    row = lax.broadcasted_iota(jnp.int32, (block_rows, LANE), 0) + i * block_rows
    col = lax.broadcasted_iota(jnp.int32, (block_rows, LANE), 1)
    idx = row * LANE + col
    mask = idx < n_valid

    # Sanitize out-of-range slots so the logs stay finite before masking.
    x = jnp.where(mask, x, jnp.float32(0.5))

    t = jnp.float32(target)
    if use_lsgan:
        # F.mse_loss elementwise term
        loss = (x - t) * (x - t)
    else:
        # F.binary_cross_entropy semantics: -(t*log(x) + (1-t)*log(1-x)) with
        # PyTorch's clamp of the log values at -100. `target` is a Python float
        # at trace time, so specialize to a single transcendental when possible.
        if target == 1.0:
            loss = -jnp.maximum(jnp.log(x), jnp.float32(-100.0))
        elif target == 0.0:
            loss = -jnp.maximum(jnp.log(1.0 - x), jnp.float32(-100.0))
        else:
            log_x = jnp.maximum(jnp.log(x), jnp.float32(-100.0))
            log_1mx = jnp.maximum(jnp.log(1.0 - x), jnp.float32(-100.0))
            loss = -(t * log_x + (1.0 - t) * log_1mx)

    acc_ref[...] += jnp.where(mask, loss, jnp.float32(0.0))

    @pl.when(i == pl.num_programs(0) - 1)
    def _():
        out_ref[0, 0] = jnp.sum(acc_ref[...])


def gan_loss(x, target_is_real, *, use_lsgan=False,
             target_real_label=1.0, target_fake_label=0.0):
    """Pallas implementation of GANLoss.forward(input, target_is_real)."""
    target = float(target_real_label) if target_is_real else float(target_fake_label)
    n = x.size

    flat = x.reshape(-1)  # row-major flatten, original dtype (cast happens in-kernel)
    rows = pl.cdiv(n, LANE)
    pad = rows * LANE - n
    if pad:
        # TODO(synk): a fully copy-free ragged tail would need 1-D blocking or a
        # manual-DMA path; a < 128-element pad keeps the wrapper simple. The pad
        # values are masked out inside the kernel, so their value is irrelevant.
        flat = jnp.concatenate([flat, jnp.zeros((pad,), dtype=flat.dtype)])
    x2 = flat.reshape(rows, LANE)

    # Block equal to the full row extent when small (always legal), otherwise a
    # large fixed tile; the last block may be partial and is handled by masking.
    block_rows = rows if rows <= MAX_BLOCK_ROWS else MAX_BLOCK_ROWS
    grid = (pl.cdiv(rows, block_rows),)

    kernel = functools.partial(
        _gan_loss_sum_kernel, target=target, use_lsgan=use_lsgan,
        n_valid=n, block_rows=block_rows)

    total = pl.pallas_call(
        kernel,
        out_shape=jax.ShapeDtypeStruct((1, 1), jnp.float32),
        grid_spec=pltpu.PrefetchScalarGridSpec(
            num_scalar_prefetch=0,
            grid=grid,
            in_specs=[pl.BlockSpec((block_rows, LANE), lambda i: (i, 0))],
            out_specs=pl.BlockSpec((1, 1), lambda i: (0, 0),
                                   memory_space=pltpu.MemorySpace.SMEM),
            scratch_shapes=[pltpu.VMEM((block_rows, LANE), jnp.float32)],
        ),
        compiler_params=pltpu.CompilerParams(
            dimension_semantics=("arbitrary",)),
    )(x2)

    # mean reduction (PyTorch default for both F.binary_cross_entropy and F.mse_loss)
    return total[0, 0] / jnp.float32(n)


def _reference_gan_loss(x, target_is_real, use_lsgan=False,
                        real_label=1.0, fake_label=0.0):
    t = jnp.float32(real_label if target_is_real else fake_label)
    xf = x.astype(jnp.float32)
    if use_lsgan:
        return jnp.mean((xf - t) ** 2)
    log_x = jnp.maximum(jnp.log(xf), -100.0)
    log_1mx = jnp.maximum(jnp.log(1.0 - xf), -100.0)
    return jnp.mean(-(t * log_x + (1.0 - t) * log_1mx))


def _check(got, want, atol=1e-5, rtol=1e-5):
    got = jax.block_until_ready(got)
    assert jnp.allclose(got, want, rtol=rtol, atol=atol), (got, want)


if __name__ == "__main__":
    key = jax.random.PRNGKey(0)
    k0, k1, k2 = jax.random.split(key, 3)

    # 1) Discriminator-style output in (0, 1), NCHW: (batch=2, channels=4, 16, 16)
    probs = jax.nn.sigmoid(jax.random.normal(k0, (2, 4, 16, 16), dtype=jnp.float32))
    _check(gan_loss(probs, True), _reference_gan_loss(probs, True))
    _check(gan_loss(probs, False), _reference_gan_loss(probs, False))
    _check(gan_loss(probs, True, use_lsgan=True),
           _reference_gan_loss(probs, True, use_lsgan=True))

    # 2) Ragged element count (n % 128 != 0): exercises the tail mask.
    probs_r = jax.nn.sigmoid(jax.random.normal(k1, (2, 4, 30, 30), dtype=jnp.float32))
    _check(gan_loss(probs_r, True), _reference_gan_loss(probs_r, True))
    _check(gan_loss(probs_r, False, use_lsgan=True),
           _reference_gan_loss(probs_r, False, use_lsgan=True))

    # 3) Multi-block grid with a partial last block (rows=1500, block=1024).
    probs_b = jax.nn.sigmoid(jax.random.normal(k2, (3, 4, 100, 160), dtype=jnp.float32))
    _check(gan_loss(probs_b, True), _reference_gan_loss(probs_b, True), atol=1e-4, rtol=1e-4)
    _check(gan_loss(probs_b, True, use_lsgan=True),
           _reference_gan_loss(probs_b, True, use_lsgan=True), atol=1e-4, rtol=1e-4)

    # 4) Label smoothing (general two-log BCE branch).
    _check(gan_loss(probs, True, target_real_label=0.9),
           _reference_gan_loss(probs, True, real_label=0.9))

    # 5) bf16 discriminator output, cast to f32 inside the kernel.
    probs_bf16 = probs.astype(jnp.bfloat16)
    _check(gan_loss(probs_bf16, True), _reference_gan_loss(probs_bf16, True),
           atol=1e-4, rtol=1e-4)

    print("KERNEL_OK")
</pallas_src>

<mosaic_0001>
module attributes {stable_mosaic.version = 11 : i64} {
  func.func @_gan_loss_sum_kernel(%arg0: i32, %arg1: memref<16x128xf32, #tpu.memory_space<vmem>>, %arg2: memref<1x1xf32, #tpu.memory_space<smem>>, %arg3: memref<16x128xf32, #tpu.memory_space<vmem>>) attributes {dimension_semantics = [#tpu.dimension_semantics<arbitrary>], iteration_bounds = array<i64: 1>, scalar_prefetch = 0 : i64, scratch_operands = 1 : i64, tpu.core_type = #tpu.core_type<tc>, window_params = [{transform_indices = @transform_0, window_bounds = array<i64: 16, 128>}, {transform_indices = @transform_1, window_bounds = array<i64: 1, 1>}]} {
    %c0_i32 = arith.constant 0 : i32
    %0 = arith.cmpi eq, %arg0, %c0_i32 : i32
    %1 = arith.extui %0 : i1 to i32
    %c0_i32_0 = arith.constant 0 : i32
    %2 = arith.cmpi ne, %1, %c0_i32_0 : i32
    scf.if %2 {
      %cst_11 = arith.constant 0.000000e+00 : f32
      %29 = vector.broadcast %cst_11 : f32 to vector<16x128xf32>
      %c0_12 = arith.constant 0 : index
      %c0_13 = arith.constant 0 : index
      %30 = vector.load %arg3[%c0_12, %c0_13] : memref<16x128xf32, #tpu.memory_space<vmem>>, vector<16x128xf32>
      tpu.vector_store %arg3[%c0_12, %c0_13], %29 {strides = array<i32>} : memref<16x128xf32, #tpu.memory_space<vmem>>, vector<16x128xf32>,
    } else {
    }
    %c0 = arith.constant 0 : index
    %c0_1 = arith.constant 0 : index
    %3 = vector.load %arg1[%c0, %c0_1] : memref<16x128xf32, #tpu.memory_space<vmem>>, vector<16x128xf32>
    %4 = tpu.iota {dimensions = array<i32: 0>} : vector<16x128xi32>
    %c16_i32 = arith.constant 16 : i32
    %5 = arith.muli %arg0, %c16_i32 : i32
    %6 = vector.broadcast %5 : i32 to vector<16x128xi32>
    %7 = arith.addi %4, %6 : vector<16x128xi32>
    %8 = tpu.iota {dimensions = array<i32: 1>} : vector<16x128xi32>
    %c128_i32 = arith.constant 128 : i32
    %9 = vector.broadcast %c128_i32 : i32 to vector<16x128xi32>
    %10 = arith.muli %7, %9 : vector<16x128xi32>
    %11 = arith.addi %10, %8 : vector<16x128xi32>
    %c2048_i32 = arith.constant 2048 : i32
    %12 = vector.broadcast %c2048_i32 : i32 to vector<16x128xi32>
    %13 = arith.cmpi slt, %11, %12 : vector<16x128xi32>
    %cst = arith.constant 5.000000e-01 : f32
    %14 = vector.broadcast %cst : f32 to vector<16x128xf32>
    %15 = arith.select %13, %3, %14 : vector<16x128xi1>, vector<16x128xf32>
    %16 = math.log %15 : vector<16x128xf32>
    %cst_2 = arith.constant -1.000000e+02 : f32
    %17 = vector.broadcast %cst_2 : f32 to vector<16x128xf32>
    %18 = arith.maximumf %16, %17 : vector<16x128xf32>
    %cst_3 = arith.constant 0.000000e+00 : f32
    %19 = vector.broadcast %cst_3 : f32 to vector<16x128xf32>
    %20 = arith.subf %19, %18 : vector<16x128xf32>
    %c0_4 = arith.constant 0 : index
    %c0_5 = arith.constant 0 : index
    %21 = vector.load %arg3[%c0_4, %c0_5] : memref<16x128xf32, #tpu.memory_space<vmem>>, vector<16x128xf32>
    %cst_6 = arith.constant 0.000000e+00 : f32
    %22 = vector.broadcast %cst_6 : f32 to vector<16x128xf32>
    %23 = arith.select %13, %20, %22 : vector<16x128xi1>, vector<16x128xf32>
    %24 = arith.addf %21, %23 : vector<16x128xf32>
    %c0_7 = arith.constant 0 : index
    %c0_8 = arith.constant 0 : index
    %25 = vector.load %arg3[%c0_7, %c0_8] : memref<16x128xf32, #tpu.memory_space<vmem>>, vector<16x128xf32>
    tpu.vector_store %arg3[%c0_7, %c0_8], %24 {strides = array<i32>} : memref<16x128xf32, #tpu.memory_space<vmem>>, vector<16x128xf32>,
    %c0_i32_9 = arith.constant 0 : i32
    %26 = arith.cmpi eq, %arg0, %c0_i32_9 : i32
    %27 = arith.extui %26 : i1 to i32
    %c0_i32_10 = arith.constant 0 : i32
    %28 = arith.cmpi ne, %27, %c0_i32_10 : i32
    scf.if %28 {
      %c0_11 = arith.constant 0 : index
      %c0_12 = arith.constant 0 : index
      %29 = vector.load %arg3[%c0_11, %c0_12] : memref<16x128xf32, #tpu.memory_space<vmem>>, vector<16x128xf32>
      %30 = vector.shape_cast %29 : vector<16x128xf32> to vector<1x16x128xf32>
      %cst_13 = arith.constant dense<0.000000e+00> : vector<1xf32>
      %31 = vector.multi_reduction <add>, %30, %cst_13 [1, 2] : vector<1x16x128xf32> to vector<1xf32>
      %32 = vector.shape_cast %31 : vector<1xf32> to vector<1x1x1xf32>
      %33 = vector.extract %32[0, 0, 0] : f32 from vector<1x1x1xf32>
      %c0_14 = arith.constant 0 : index
      %c0_15 = arith.constant 0 : index
      %34 = memref.load %arg2[%c0_14, %c0_15] : memref<1x1xf32, #tpu.memory_space<smem>>
      memref.store %33, %arg2[%c0_14, %c0_15] : memref<1x1xf32, #tpu.memory_space<smem>>
    } else {
    }
    return
  }
  func.func @transform_0(%arg0: i32) -> (i32, i32) {
    %c0_i32 = arith.constant 0 : i32
    %c0_i32_0 = arith.constant 0 : i32
    return %arg0, %c0_i32 : i32, i32
  }
  func.func @transform_1(%arg0: i32) -> (i32, i32) {
    %c0_i32 = arith.constant 0 : i32
    %c0_i32_0 = arith.constant 0 : i32
    %c0_i32_1 = arith.constant 0 : i32
    return %c0_i32, %c0_i32_0 : i32, i32
  }
}

</mosaic_0001>

<llo_original>
// kernel: tpu_custom_call.1
$region0: #{tpu_custom_call.1}
  #allocation0 [shape = 'u32[]', space=smem, size = 0x4, offset = 0x4, fixed_abs, tag = 'smem constant byte address 0x4 - core index']
  #allocation1 [shape = 'u32[144,128]{1,0:T(1,128)}', space=vmem, size = 0x12000, scoped, tag = 'internal scratch']
  #allocation2 [shape = 'f32[16,128]{1,0:T(8,128)}', space=vmem, size = 0x2000, scoped, tag = 'scratch operand']
  %s0 = inlined_call_operand.hbm [shape: f32[16,128], index: 0, kind: input, shape index: {}]
  %s1 = inlined_call_operand.hbm [shape: f32[1,1], index: 1, kind: output, shape index: {}]
  %s2 = sld [smem:[#allocation0]]
  $region26: #{tpu_custom_call.1} parent=0
    _
  %s4 = ssub.s32 1, %s2
  %s5 = scalar_select 0, %s4, %s2
  $region1: #{tpu_custom_call.1} parent=0
    #allocation3 [shape = 'u8[8192]{0}', space=vmem, size = 0x2000, scoped, tag = 'input window, operand 0, single buffered']
    #allocation4 [shape = 's32[1]{0}', space=sflag, size = 0x4, scoped, tag = 'scoped memory for tpu_custom_call.1']
    #allocation5 [shape = 's32[1]{0}', space=sflag, size = 0x4, scoped, tag = 'scoped memory for tpu_custom_call.1']
    #allocation6 [shape = 'u8[512]{0}', space=smem, size = 0x200, scoped, tag = 'output window, operand 0, single buffered']
    %6 = vsyncpa [#allocation4], 0
    %7 = vsyncpa [#allocation5], 0
    // Predicated region
    $region2: #{tpu_custom_call.1} parent=1 // pred_check
      _
    $region3: #{tpu_custom_call.1} parent=1 // pred_check_branch
      %9 = sbr.rel (0) target = $region5
    $region4: #{tpu_custom_call.1} parent=1 // pred_region
      %s11 = ssub.s32 256, 256
      %12 = vsyncadd [#allocation4], %s11
      %s13 = sshll.u32 [#allocation3], 4
      %s14 = int_to_ptr.vmem [resolvable:$true] %s13
      %19 = dma.hbm_to_vmem [thread:$0]  %s0, 256, %s14, [#allocation4], 128, 128, 8
    $region5: #{tpu_custom_call.1} parent=1 // pred_fallthru
      _
    // Predicated region
    $region6: #{tpu_custom_call.1} parent=1 // pred_check
      _
    $region7: #{tpu_custom_call.1} parent=1 // pred_check_branch
      %21 = sbr.rel (0) target = $region9
    $region8: #{tpu_custom_call.1} parent=1 // pred_region
      %22 = dma.done [#allocation4], 256
    $region9: #{tpu_custom_call.1} parent=1 // pred_fallthru
      _
    %p23 = scmp.eq.s32.totalorder 0, 0
    // Predicated region
    $region10: #{tpu_custom_call.1} parent=1 // pred_check
      %p24 = pneg %p23
    $region11: #{tpu_custom_call.1} parent=1 // pred_check_branch
      %26 = sbr.rel (%p24) target = $region13
    $region12: #{tpu_custom_call.1} parent=1 // pred_region
      %27 = vst [vmem:[#allocation2] sm:$0xff] 0.0
      %28 = vst [vmem:[#allocation2 + $0x8] sm:$0xff] 0.0
    $region13: #{tpu_custom_call.1} parent=1 // pred_fallthru
      _
    %v29 = vld [vmem:[#allocation3] sm:$0xff]
    %v30 = vld [vmem:[#allocation3 + $0x8] sm:$0xff]
    %v31 = vlaneseq
    %v32 = vshrl.u32 %v31, 7
    %v33 = vadd.s32 %v32, 8
    %s34 = smul.u32 0, 16
    %v35 = vstv %s34
    %v36 = vadd.s32 %v32, %v35
    %v37 = vadd.s32 %v33, %v35
    %v38 = vlaneseq
    %v39 = vand.u32 %v38, 127
    %v40 = vmul.u32 %v36, 128
    %v41 = vmul.u32 %v37, 128
    %v42 = vadd.s32 %v40, %v39
    %v43 = vadd.s32 %v41, %v39
    %vm44 = vcmp.lt.s32.totalorder %v42, 2048
    %vm45 = vcmp.lt.s32.totalorder %v43, 2048
    %v46 = vsel %vm44, %v29, 0.5
    %v47 = vsel %vm45, %v30, 0.5
    %v48 = vlog2.pop %v46
    %v49 = vmul.f32 %v48, 0.6931472
    %v50 = vlog2.pop %v47
    %v51 = vmul.f32 %v50, 0.6931472
    %v52 = vmax.f32 %v49, -100.0
    %v53 = vmax.f32 %v51, -100.0
    %v54 = vsub.f32 0.0, %v52
    %v55 = vsub.f32 0.0, %v53
    %v56 = vld [vmem:[#allocation2] sm:$0xff]
    %v57 = vld [vmem:[#allocation2 + $0x8] sm:$0xff]
    %v58 = vsel %vm44, %v54, 0.0
    %v59 = vsel %vm45, %v55, 0.0
    %v60 = vadd.f32 %v56, %v58
    %v61 = vadd.f32 %v57, %v59
    %62 = vst [vmem:[#allocation2] sm:$0xff] %v60
    %63 = vst [vmem:[#allocation2 + $0x8] sm:$0xff] %v61
    // Predicated region
    $region14: #{tpu_custom_call.1} parent=1 // pred_check
      %p64 = pneg %p23
    $region15: #{tpu_custom_call.1} parent=1 // pred_check_branch
      %66 = sbr.rel (%p64) target = $region17
    $region16: #{tpu_custom_call.1} parent=1 // pred_region
      %v67 = vld [vmem:[#allocation2] sm:$0xff]
      %v68 = vld [vmem:[#allocation2 + $0x8] sm:$0xff]
      %v69 = vadd.f32 %v67, %v68
      %70 = vadd.xlane.f32.xlu0 %v69
      %v71 = vpop.xlane.xlu0 %70
      %v72 = vrot.slane %v71, 4
      %v73 = vadd.f32 %v71, %v72
      %v74 = vrot.slane %v73, 2
      %v75 = vadd.f32 %v73, %v74
      %v76 = vrot.slane %v75, 1
      %v77 = vadd.f32 %v75, %v76
      %s78 = vtos %v77
      %s79 = scalar_lea.smem [#allocation6], 0
      %80 = sst [smem:[%s79]] %s78
    $region17: #{tpu_custom_call.1} parent=1 // pred_fallthru
      _
    // Predicated region
    $region18: #{tpu_custom_call.1} parent=1 // pred_check
      _
    $region19: #{tpu_custom_call.1} parent=1 // pred_check_branch
      %82 = sbr.rel (0) target = $region21
    $region20: #{tpu_custom_call.1} parent=1 // pred_region
      %s84 = ssub.s32 16, 16
      %85 = vsyncadd [#allocation5], %s84
      %88 = dma.smem_to_hbm [#allocation6], 16, %s1, [#allocation5]
    $region21: #{tpu_custom_call.1} parent=1 // pred_fallthru
      _
    // Predicated region
    $region22: #{tpu_custom_call.1} parent=1 // pred_check
      _
    $region23: #{tpu_custom_call.1} parent=1 // pred_check_branch
      %90 = sbr.rel (0) target = $region25
    $region24: #{tpu_custom_call.1} parent=1 // pred_region
      %91 = dma.done [#allocation5], 16
    $region25: #{tpu_custom_call.1} parent=1 // pred_fallthru
      _
    %92 = sfence
    %93 = vsyncpa [#allocation4], 1
    %94 = vsyncpa [#allocation5], 1

</llo_original>
